<compile_context>
chip_gen: v7x
topology: tpu7x:2x2x1
jax: 0.10.0
libtpu: 0.0.40
codegen_flags: <defaults>
</compile_context>

<pallas_src>
import jax
import jax.numpy as jnp
from jax import lax
from jax.experimental import pallas as pl
from jax.experimental.pallas import tpu as pltpu

# Small synthetic sizes consistent with the module (class_num=2; embedding_dim, ngram shrunk).
B = 2          # batch
L = 16         # sequence length
E = 128        # embedding_dim
C = 2          # class_num
NGRAM = 3      # ngram
K = 2 * NGRAM + 1       # conv kernel width (same-length conv with padding=NGRAM)
VOCAB = 50
EPS = 1e-12

LPAD = L + 2 * NGRAM    # per-batch zero-padded conv width (22)
W_ALL = B * LPAD        # packed padded width for all batch rows (44)
WV = W_ALL - (K - 1)    # width covering every shifted window we need (38)
OUT_PAD = 128           # lane-dense output width

# Layout assumptions for this single-tile formulation (documented per review):
assert W_ALL <= 128, "packed padded map must fit one lane tile"
assert C * K <= 128 and B <= 8 and C <= 8


def leam_kernel(emb_ref, embc_ref, convw_ref, convb_ref, layw_ref, layb_ref,
                logits_ref, beta_ref):
    """Whole forward (post embedding-gather), all batch rows in one pass.

    emb_ref   : (B*L, E)   VMEM  token embeddings, flattened over (batch, seq)
    embc_ref  : (C, E)     VMEM  class-embedding table
    convw_ref : (C, C*K)   VMEM  Conv1d weight, row co, col ci*K + k
    convb_ref : (C, 1)     VMEM  Conv1d bias
    layw_ref  : (C, E)     VMEM  Linear weight (torch layout: out, in)
    layb_ref  : (1, C)     VMEM  Linear bias
    logits_ref: (B, 128)   VMEM  out: log-softmax logits in lanes [0, C)
    beta_ref  : (B, 128)   VMEM  out: attention weights in lanes [0, L)
    """
    f32 = jnp.float32

    # ---- class-embedding L2 normalization (shared across the batch) ----
    embc = embc_ref[...].astype(f32)                                    # (C, E)
    embc_n = embc / jnp.maximum(
        jnp.sqrt(jnp.sum(embc * embc, axis=-1, keepdims=True)), EPS)

    # ---- token-embedding L2 normalization, all B*L tokens at once ----
    emb = emb_ref[...].astype(f32)                                      # (B*L, E)
    emb_n = emb / jnp.maximum(
        jnp.sqrt(jnp.sum(emb * emb, axis=-1, keepdims=True)), EPS)

    # ---- cosine map for every (class, token) pair: one MXU matmul ----
    # g[c, b*L + l] = <embc_n[c], emb_n[b*L + l]>     (tokens land on the lane axis)
    g = lax.dot_general(embc_n, emb_n, (((1,), (1,)), ((), ())),
                        preferred_element_type=f32)                     # (C, B*L)

    # ---- Conv1d(C, C, K, padding=NGRAM), ReLU, max over channels ----
    # Pack the batch on the lane axis with a NGRAM-wide zero halo around each batch
    # segment so a lane shift of up to NGRAM never leaks across batch boundaries.
    zhalo = jnp.zeros((C, NGRAM), f32)
    pieces = []
    for b in range(B):
        pieces += [zhalo, g[:, b * L:(b + 1) * L], zhalo]
    p = jnp.concatenate(pieces, axis=-1)                                # (C, W_ALL)

    # im2col: row (ci*K + k) = p[ci, k : k + WV]  (the k-shifted padded map).
    rows = [p[ci:ci + 1, k:k + WV] for ci in range(C) for k in range(K)]
    m = jnp.concatenate(rows, axis=0)                                   # (C*K, WV)

    w2 = convw_ref[...].astype(f32)                                     # (C, C*K)
    bias = convb_ref[...].astype(f32)                                   # (C, 1)
    conv = lax.dot_general(w2, m, (((1,), (0,)), ((), ())),
                           preferred_element_type=f32) + bias           # (C, WV)
    conv = jnp.maximum(conv, 0.0)                                       # ReLU

    # max over output channels (C tiny & static -> explicit row maximum).
    gmax = conv[0:1, :]
    for co in range(1, C):
        gmax = jnp.maximum(gmax, conv[co:co + 1, :])                    # (1, WV)

    # Gather the L valid lanes of each batch segment -> (B, L), batch on sublanes.
    beta_pre = jnp.concatenate(
        [gmax[:, b * LPAD:b * LPAD + L] for b in range(B)], axis=0)     # (B, L)

    # ---- softmax over the sequence dim, one pass for the whole batch ----
    mmax = jnp.max(beta_pre, axis=-1, keepdims=True)                    # (B, 1)
    ex = jnp.exp(beta_pre - mmax)
    beta = ex / jnp.sum(ex, axis=-1, keepdims=True)                     # (B, L)

    # ---- weighted pooling  z[b] = sum_l beta[b, l] * emb[b, l, :] ----
    # One MXU matmul with a block-diagonal beta matrix: entry (b, b*L + l) = beta[b, l].
    beta_tiled = jnp.tile(beta, (1, B))                                 # (B, B*L)
    col = lax.broadcasted_iota(jnp.int32, (B, B * L), 1)
    row = lax.broadcasted_iota(jnp.int32, (B, B * L), 0)
    in_block = (col >= row * L) & (col < (row + 1) * L)
    beta_mat = jnp.where(in_block, beta_tiled, 0.0)                     # (B, B*L)
    z = lax.dot_general(beta_mat, emb, (((1,), (0,)), ((), ())),
                        preferred_element_type=f32)                     # (B, E)

    # ---- Linear(E, C) + log_softmax, batched over B ----
    layw = layw_ref[...].astype(f32)                                    # (C, E)
    layb = layb_ref[...].astype(f32)                                    # (1, C)
    out = lax.dot_general(z, layw, (((1,), (1,)), ((), ())),
                          preferred_element_type=f32) + layb            # (B, C)
    mo = jnp.max(out, axis=-1, keepdims=True)
    lse = mo + jnp.log(jnp.sum(jnp.exp(out - mo), axis=-1, keepdims=True))
    logp = out - lse                                                    # (B, C)

    # ---- lane-dense, single-shot output stores ----
    logits_ref[...] = jnp.concatenate(
        [logp, jnp.zeros((B, OUT_PAD - C), f32)], axis=-1)
    beta_ref[...] = jnp.concatenate(
        [beta, jnp.zeros((B, OUT_PAD - L), f32)], axis=-1)


def classifier_forward(inputs, params):
    """inputs: (B, L) int32 token ids.  Returns (logits (B, C), beta (B, L, 1))."""
    emb_table, embc_table, conv_w, conv_b, lay_w, lay_b = params
    # Embedding gather is plain-JAX glue (data-dependent gather).
    # TODO(synk): at realistic vocab/L, move this gather into the kernel
    # (PrefetchScalarGridSpec + row gather) to avoid an HBM round-trip of emb.
    emb = emb_table[inputs]                                             # (B, L, E)
    emb_flat = emb.reshape(B * L, E)
    conv_w2 = conv_w.reshape(C, C * K)                                  # (C, C*K)
    conv_b2 = conv_b.reshape(C, 1)
    lay_b2 = lay_b.reshape(1, C)

    vmem = pl.BlockSpec(memory_space=pltpu.MemorySpace.VMEM)
    logits_pad, beta_pad = pl.pallas_call(
        leam_kernel,
        out_shape=(jax.ShapeDtypeStruct((B, OUT_PAD), jnp.float32),
                   jax.ShapeDtypeStruct((B, OUT_PAD), jnp.float32)),
        in_specs=[vmem, vmem, vmem, vmem, vmem, vmem],
        out_specs=(vmem, vmem),
    )(emb_flat, embc_table, conv_w2, conv_b2, lay_w, lay_b2)

    logits = logits_pad[:, :C]
    beta = beta_pad[:, :L][..., None]                                   # (B, L, 1)
    return logits, beta


def classifier_ref(inputs, params):
    """Pure-JAX reference of the PyTorch forward for validation."""
    emb_table, embc_table, conv_w, conv_b, lay_w, lay_b = params
    emb = emb_table[inputs]                                             # (B, L, E)
    emb_n = emb / jnp.maximum(
        jnp.sqrt(jnp.sum(emb * emb, axis=2, keepdims=True)), EPS)
    embc_n = embc_table / jnp.maximum(
        jnp.sqrt(jnp.sum(embc_table * embc_table, axis=1, keepdims=True)), EPS)
    g = jnp.einsum('ce,ble->bcl', embc_n, emb_n, precision='highest')   # (B, C, L)
    gp = jnp.pad(g, ((0, 0), (0, 0), (NGRAM, NGRAM)))
    conv = []
    for co in range(C):
        acc = jnp.full((inputs.shape[0], L), conv_b[co], jnp.float32)
        for ci in range(C):
            for k in range(K):
                acc = acc + conv_w[co, ci, k] * gp[:, ci, k:k + L]
        conv.append(acc[:, None, :])
    gconv = jnp.maximum(jnp.concatenate(conv, axis=1), 0.0)             # (B, C, L)
    beta = jax.nn.softmax(jnp.max(gconv, axis=1), axis=1)[..., None]    # (B, L, 1)
    z = jnp.sum(beta * emb, axis=1)                                     # (B, E)
    out = jnp.einsum('be,ce->bc', z, lay_w, precision='highest') + lay_b
    logits = jax.nn.log_softmax(out, axis=1)
    return logits, beta


if __name__ == "__main__":
    key = jax.random.PRNGKey(0)
    k0, k1, k2, k3, k4, k5, k6 = jax.random.split(key, 7)

    # Deterministic synthetic parameters (shapes match the module's __init__).
    emb_table = jax.random.normal(k1, (VOCAB, E), jnp.float32)
    emb_table = emb_table.at[0].set(0.0)                    # padding_idx=0
    embc_table = jax.random.normal(k2, (C, E), jnp.float32)
    bc = 1.0 / (C * K) ** 0.5
    conv_w = jax.random.uniform(k3, (C, C, K), jnp.float32, -bc, bc)
    conv_b = jax.random.uniform(k4, (C,), jnp.float32, -bc, bc)
    bl = 1.0 / E ** 0.5
    lay_w = jax.random.uniform(k5, (C, E), jnp.float32, -bl, bl)
    lay_b = jax.random.uniform(k6, (C,), jnp.float32, -bl, bl)
    params = (emb_table, embc_table, conv_w, conv_b, lay_w, lay_b)

    inputs = jax.random.randint(k0, (B, L), 0, VOCAB, jnp.int32)

    logits, beta = classifier_forward(inputs, params)
    (logits, beta) = jax.block_until_ready((logits, beta))

    ref_logits, ref_beta = classifier_ref(inputs, params)
    assert logits.shape == (B, C) and beta.shape == (B, L, 1)
    assert jnp.allclose(logits, ref_logits, atol=1e-3, rtol=1e-3), "logits mismatch"
    assert jnp.allclose(beta, ref_beta, atol=1e-3, rtol=1e-3), "beta mismatch"
    print("KERNEL_OK")
</pallas_src>

<mosaic_0001>
module attributes {stable_mosaic.version = 11 : i64} {
  func.func @leam_kernel(%arg0: memref<32x128xf32, #tpu.memory_space<vmem>>, %arg1: memref<2x128xf32, #tpu.memory_space<vmem>>, %arg2: memref<2x14xf32, #tpu.memory_space<vmem>>, %arg3: memref<2x1xf32, #tpu.memory_space<vmem>>, %arg4: memref<2x128xf32, #tpu.memory_space<vmem>>, %arg5: memref<1x2xf32, #tpu.memory_space<vmem>>, %arg6: memref<2x128xf32, #tpu.memory_space<vmem>>, %arg7: memref<2x128xf32, #tpu.memory_space<vmem>>) attributes {dimension_semantics = [], scalar_prefetch = 0 : i64, scratch_operands = 0 : i64, tpu.core_type = #tpu.core_type<tc>} {
    %c0 = arith.constant 0 : index
    %c0_0 = arith.constant 0 : index
    %0 = vector.load %arg1[%c0, %c0_0] : memref<2x128xf32, #tpu.memory_space<vmem>>, vector<2x128xf32>
    %1 = arith.mulf %0, %0 : vector<2x128xf32>
    %cst = arith.constant dense<0.000000e+00> : vector<2xf32>
    %2 = vector.multi_reduction <add>, %1, %cst [1] : vector<2x128xf32> to vector<2xf32>
    %3 = vector.shape_cast %2 : vector<2xf32> to vector<2x1xf32>
    %4 = math.sqrt %3 : vector<2x1xf32>
    %cst_1 = arith.constant 9.99999996E-13 : f32
    %5 = vector.broadcast %cst_1 : f32 to vector<2x1xf32>
    %6 = arith.maximumf %4, %5 : vector<2x1xf32>
    %7 = vector.broadcast %6 : vector<2x1xf32> to vector<2x128xf32>
    %8 = arith.divf %0, %7 : vector<2x128xf32>
    %c0_2 = arith.constant 0 : index
    %c0_3 = arith.constant 0 : index
    %9 = vector.load %arg0[%c0_2, %c0_3] : memref<32x128xf32, #tpu.memory_space<vmem>>, vector<32x128xf32>
    %10 = arith.mulf %9, %9 : vector<32x128xf32>
    %cst_4 = arith.constant dense<0.000000e+00> : vector<32xf32>
    %11 = vector.multi_reduction <add>, %10, %cst_4 [1] : vector<32x128xf32> to vector<32xf32>
    %12 = vector.shape_cast %11 : vector<32xf32> to vector<32x1xf32>
    %13 = math.sqrt %12 : vector<32x1xf32>
    %cst_5 = arith.constant 9.99999996E-13 : f32
    %14 = vector.broadcast %cst_5 : f32 to vector<32x1xf32>
    %15 = arith.maximumf %13, %14 : vector<32x1xf32>
    %16 = vector.broadcast %15 : vector<32x1xf32> to vector<32x128xf32>
    %17 = arith.divf %9, %16 : vector<32x128xf32>
    %cst_6 = arith.constant dense<0.000000e+00> : vector<2x32xf32>
    %18 = tpu.matmul %8, %17, %cst_6 {dimension_numbers = #tpu.dot_dimension_numbers<[1], [1], [0], [0], [0, 0, 1, 0], [], []>} : vector<2x128xf32>, vector<32x128xf32>, vector<2x32xf32> -> vector<2x32xf32>
    %cst_7 = arith.constant 0.000000e+00 : f32
    %19 = vector.broadcast %cst_7 : f32 to vector<2x3xf32>
    %20 = vector.extract_strided_slice %18 {offsets = [0, 0], sizes = [2, 16], strides = [1, 1]} : vector<2x32xf32> to vector<2x16xf32>
    %21 = vector.extract_strided_slice %18 {offsets = [0, 16], sizes = [2, 16], strides = [1, 1]} : vector<2x32xf32> to vector<2x16xf32>
    %22 = tpu.concatenate %19, %20, %19, %19, %21, %19 in 1 : vector<2x3xf32>, vector<2x16xf32>, vector<2x3xf32>, vector<2x3xf32>, vector<2x16xf32>, vector<2x3xf32> -> vector<2x44xf32>
    %23 = vector.extract_strided_slice %22 {offsets = [0, 0], sizes = [1, 38], strides = [1, 1]} : vector<2x44xf32> to vector<1x38xf32>
    %24 = vector.extract_strided_slice %22 {offsets = [0, 1], sizes = [1, 38], strides = [1, 1]} : vector<2x44xf32> to vector<1x38xf32>
    %25 = vector.extract_strided_slice %22 {offsets = [0, 2], sizes = [1, 38], strides = [1, 1]} : vector<2x44xf32> to vector<1x38xf32>
    %26 = vector.extract_strided_slice %22 {offsets = [0, 3], sizes = [1, 38], strides = [1, 1]} : vector<2x44xf32> to vector<1x38xf32>
    %27 = vector.extract_strided_slice %22 {offsets = [0, 4], sizes = [1, 38], strides = [1, 1]} : vector<2x44xf32> to vector<1x38xf32>
    %28 = vector.extract_strided_slice %22 {offsets = [0, 5], sizes = [1, 38], strides = [1, 1]} : vector<2x44xf32> to vector<1x38xf32>
    %29 = vector.extract_strided_slice %22 {offsets = [0, 6], sizes = [1, 38], strides = [1, 1]} : vector<2x44xf32> to vector<1x38xf32>
    %30 = vector.extract_strided_slice %22 {offsets = [1, 0], sizes = [1, 38], strides = [1, 1]} : vector<2x44xf32> to vector<1x38xf32>
    %31 = vector.extract_strided_slice %22 {offsets = [1, 1], sizes = [1, 38], strides = [1, 1]} : vector<2x44xf32> to vector<1x38xf32>
    %32 = vector.extract_strided_slice %22 {offsets = [1, 2], sizes = [1, 38], strides = [1, 1]} : vector<2x44xf32> to vector<1x38xf32>
    %33 = vector.extract_strided_slice %22 {offsets = [1, 3], sizes = [1, 38], strides = [1, 1]} : vector<2x44xf32> to vector<1x38xf32>
    %34 = vector.extract_strided_slice %22 {offsets = [1, 4], sizes = [1, 38], strides = [1, 1]} : vector<2x44xf32> to vector<1x38xf32>
    %35 = vector.extract_strided_slice %22 {offsets = [1, 5], sizes = [1, 38], strides = [1, 1]} : vector<2x44xf32> to vector<1x38xf32>
    %36 = vector.extract_strided_slice %22 {offsets = [1, 6], sizes = [1, 38], strides = [1, 1]} : vector<2x44xf32> to vector<1x38xf32>
    %37 = tpu.concatenate %23, %24, %25, %26, %27, %28, %29, %30, %31, %32, %33, %34, %35, %36 in 0 : vector<1x38xf32>, vector<1x38xf32>, vector<1x38xf32>, vector<1x38xf32>, vector<1x38xf32>, vector<1x38xf32>, vector<1x38xf32>, vector<1x38xf32>, vector<1x38xf32>, vector<1x38xf32>, vector<1x38xf32>, vector<1x38xf32>, vector<1x38xf32>, vector<1x38xf32> -> vector<14x38xf32>
    %c0_8 = arith.constant 0 : index
    %c0_9 = arith.constant 0 : index
    %38 = vector.load %arg2[%c0_8, %c0_9] : memref<2x14xf32, #tpu.memory_space<vmem>>, vector<2x14xf32>
    %c0_10 = arith.constant 0 : index
    %c0_11 = arith.constant 0 : index
    %39 = vector.load %arg3[%c0_10, %c0_11] : memref<2x1xf32, #tpu.memory_space<vmem>>, vector<2x1xf32>
    %cst_12 = arith.constant dense<0.000000e+00> : vector<2x38xf32>
    %40 = tpu.matmul %38, %37, %cst_12 {dimension_numbers = #tpu.dot_dimension_numbers<[1], [0], [0], [1], [0, 0, 1, 1], [], []>} : vector<2x14xf32>, vector<14x38xf32>, vector<2x38xf32> -> vector<2x38xf32>
    %41 = vector.broadcast %39 : vector<2x1xf32> to vector<2x38xf32>
    %42 = arith.addf %40, %41 : vector<2x38xf32>
    %cst_13 = arith.constant 0.000000e+00 : f32
    %43 = vector.broadcast %cst_13 : f32 to vector<2x38xf32>
    %44 = arith.maximumf %42, %43 : vector<2x38xf32>
    %45 = vector.extract_strided_slice %44 {offsets = [0, 0], sizes = [1, 38], strides = [1, 1]} : vector<2x38xf32> to vector<1x38xf32>
    %46 = vector.extract_strided_slice %44 {offsets = [1, 0], sizes = [1, 38], strides = [1, 1]} : vector<2x38xf32> to vector<1x38xf32>
    %47 = arith.maximumf %45, %46 : vector<1x38xf32>
    %48 = vector.extract_strided_slice %47 {offsets = [0, 0], sizes = [1, 16], strides = [1, 1]} : vector<1x38xf32> to vector<1x16xf32>
    %49 = vector.extract_strided_slice %47 {offsets = [0, 22], sizes = [1, 16], strides = [1, 1]} : vector<1x38xf32> to vector<1x16xf32>
    %50 = tpu.concatenate %48, %49 in 0 : vector<1x16xf32>, vector<1x16xf32> -> vector<2x16xf32>
    %cst_14 = arith.constant dense<0xFF800000> : vector<2xf32>
    %51 = vector.multi_reduction <maximumf>, %50, %cst_14 [1] : vector<2x16xf32> to vector<2xf32>
    %52 = vector.shape_cast %51 : vector<2xf32> to vector<2x1xf32>
    %53 = vector.broadcast %52 : vector<2x1xf32> to vector<2x16xf32>
    %54 = arith.subf %50, %53 : vector<2x16xf32>
    %55 = math.exp %54 : vector<2x16xf32>
    %cst_15 = arith.constant dense<0.000000e+00> : vector<2xf32>
    %56 = vector.multi_reduction <add>, %55, %cst_15 [1] : vector<2x16xf32> to vector<2xf32>
    %57 = vector.shape_cast %56 : vector<2xf32> to vector<2x1xf32>
    %58 = vector.broadcast %57 : vector<2x1xf32> to vector<2x16xf32>
    %59 = arith.divf %55, %58 : vector<2x16xf32>
    %60 = tpu.concatenate %59, %59 in 1 : vector<2x16xf32>, vector<2x16xf32> -> vector<2x32xf32>
    %61 = tpu.iota {dimensions = array<i32: 1>} : vector<2x32xi32>
    %62 = tpu.iota {dimensions = array<i32: 0>} : vector<2x32xi32>
    %c16_i32 = arith.constant 16 : i32
    %63 = vector.broadcast %c16_i32 : i32 to vector<2x32xi32>
    %64 = arith.muli %62, %63 : vector<2x32xi32>
    %65 = arith.cmpi sge, %61, %64 : vector<2x32xi32>
    %c1_i32 = arith.constant 1 : i32
    %66 = vector.broadcast %c1_i32 : i32 to vector<2x32xi32>
    %67 = arith.addi %62, %66 : vector<2x32xi32>
    %c16_i32_16 = arith.constant 16 : i32
    %68 = vector.broadcast %c16_i32_16 : i32 to vector<2x32xi32>
    %69 = arith.muli %67, %68 : vector<2x32xi32>
    %70 = arith.cmpi slt, %61, %69 : vector<2x32xi32>
    %71 = arith.andi %65, %70 : vector<2x32xi1>
    %cst_17 = arith.constant 0.000000e+00 : f32
    %72 = vector.broadcast %cst_17 : f32 to vector<2x32xf32>
    %73 = arith.select %71, %60, %72 : vector<2x32xi1>, vector<2x32xf32>
    %cst_18 = arith.constant dense<0.000000e+00> : vector<2x128xf32>
    %74 = tpu.matmul %73, %9, %cst_18 {dimension_numbers = #tpu.dot_dimension_numbers<[1], [0], [0], [1], [0, 0, 1, 1], [], []>} : vector<2x32xf32>, vector<32x128xf32>, vector<2x128xf32> -> vector<2x128xf32>
    %c0_19 = arith.constant 0 : index
    %c0_20 = arith.constant 0 : index
    %75 = vector.load %arg4[%c0_19, %c0_20] : memref<2x128xf32, #tpu.memory_space<vmem>>, vector<2x128xf32>
    %c0_21 = arith.constant 0 : index
    %c0_22 = arith.constant 0 : index
    %76 = vector.load %arg5[%c0_21, %c0_22] : memref<1x2xf32, #tpu.memory_space<vmem>>, vector<1x2xf32>
    %cst_23 = arith.constant dense<0.000000e+00> : vector<2x2xf32>
    %77 = tpu.matmul %74, %75, %cst_23 {dimension_numbers = #tpu.dot_dimension_numbers<[1], [1], [0], [0], [0, 0, 1, 0], [], []>} : vector<2x128xf32>, vector<2x128xf32>, vector<2x2xf32> -> vector<2x2xf32>
    %78 = vector.broadcast %76 : vector<1x2xf32> to vector<2x2xf32>
    %79 = arith.addf %77, %78 : vector<2x2xf32>
    %cst_24 = arith.constant dense<0xFF800000> : vector<2xf32>
    %80 = vector.multi_reduction <maximumf>, %79, %cst_24 [1] : vector<2x2xf32> to vector<2xf32>
    %81 = vector.shape_cast %80 : vector<2xf32> to vector<2x1xf32>
    %82 = vector.broadcast %81 : vector<2x1xf32> to vector<2x2xf32>
    %83 = arith.subf %79, %82 : vector<2x2xf32>
    %84 = math.exp %83 : vector<2x2xf32>
    %cst_25 = arith.constant dense<0.000000e+00> : vector<2xf32>
    %85 = vector.multi_reduction <add>, %84, %cst_25 [1] : vector<2x2xf32> to vector<2xf32>
    %86 = vector.shape_cast %85 : vector<2xf32> to vector<2x1xf32>
    %87 = math.log %86 : vector<2x1xf32>
    %88 = arith.addf %81, %87 : vector<2x1xf32>
    %89 = vector.broadcast %88 : vector<2x1xf32> to vector<2x2xf32>
    %90 = arith.subf %79, %89 : vector<2x2xf32>
    %cst_26 = arith.constant 0.000000e+00 : f32
    %91 = vector.broadcast %cst_26 : f32 to vector<2x126xf32>
    %92 = tpu.concatenate %90, %91 in 1 : vector<2x2xf32>, vector<2x126xf32> -> vector<2x128xf32>
    %c0_27 = arith.constant 0 : index
    %c0_28 = arith.constant 0 : index
    %93 = vector.load %arg6[%c0_27, %c0_28] : memref<2x128xf32, #tpu.memory_space<vmem>>, vector<2x128xf32>
    tpu.vector_store %arg6[%c0_27, %c0_28], %92 {strides = array<i32>} : memref<2x128xf32, #tpu.memory_space<vmem>>, vector<2x128xf32>,
    %cst_29 = arith.constant 0.000000e+00 : f32
    %94 = vector.broadcast %cst_29 : f32 to vector<2x112xf32>
    %95 = tpu.concatenate %59, %94 in 1 : vector<2x16xf32>, vector<2x112xf32> -> vector<2x128xf32>
    %c0_30 = arith.constant 0 : index
    %c0_31 = arith.constant 0 : index
    %96 = vector.load %arg7[%c0_30, %c0_31] : memref<2x128xf32, #tpu.memory_space<vmem>>, vector<2x128xf32>
    tpu.vector_store %arg7[%c0_30, %c0_31], %95 {strides = array<i32>} : memref<2x128xf32, #tpu.memory_space<vmem>>, vector<2x128xf32>,
    return
  }
}

</mosaic_0001>

<llo_original>
// kernel: tpu_custom_call.1
$region0: #{tpu_custom_call.1}
  #allocation0 [shape = 'u32[]', space=smem, size = 0x4, offset = 0x4, fixed_abs, tag = 'smem constant byte address 0x4 - core index']
  #allocation1 [shape = 'u32[144,128]{1,0:T(1,128)}', space=vmem, size = 0x12000, scoped, tag = 'internal scratch']
  %s0 = inlined_call_operand.hbm [shape: f32[32,128], index: 0, kind: input, shape index: {}]
  %s1 = inlined_call_operand.vmem [shape: f32[2,128], index: 1, kind: input, shape index: {}]
  %s2 = inlined_call_operand.vmem [shape: f32[2,14], index: 2, kind: input, shape index: {}]
  %s3 = inlined_call_operand.vmem [shape: f32[2,1], index: 3, kind: input, shape index: {}]
  %s4 = inlined_call_operand.vmem [shape: f32[2,128], index: 4, kind: input, shape index: {}]
  %s5 = inlined_call_operand.vmem [shape: f32[1,2], index: 5, kind: input, shape index: {}]
  %s6 = inlined_call_operand.hbm [shape: f32[2,128], index: 6, kind: output, shape index: {0}]
  %s7 = inlined_call_operand.hbm [shape: f32[2,128], index: 7, kind: output, shape index: {1}]
  %8 = xla_tuple %s6, %s7
  %s9 = sld [smem:[#allocation0]]
  $region46: #{tpu_custom_call.1} parent=0
    _
  %s11 = ssub.s32 1, %s9
  %s12 = scalar_select 0, %s11, %s9
  $region1: #{tpu_custom_call.1} parent=0
    #allocation2 [shape = 'u8[16384]{0}', space=vmem, size = 0x4000, scoped, tag = 'input window, operand 0, single buffered']
    #allocation3 [shape = 's32[1]{0}', space=sflag, size = 0x4, scoped, tag = 'scoped memory for tpu_custom_call.1']
    #allocation4 [shape = 's32[1]{0}', space=sflag, size = 0x4, scoped, tag = 'scoped memory for tpu_custom_call.1']
    #allocation5 [shape = 'u8[1024]{0}', space=vmem, size = 0x400, scoped, tag = 'output window, operand 0, single buffered']
    #allocation6 [shape = 'u8[1024]{0}', space=vmem, size = 0x400, scoped, tag = 'output window, operand 1, single buffered']
    #allocation7 [shape = 's32[1]{0}', space=sflag, size = 0x4, scoped, tag = 'scoped memory for tpu_custom_call.1']
    %13 = vsyncpa [#allocation3], 0
    %14 = vsyncpa [#allocation4], 0
    %15 = vsyncpa [#allocation7], 0
    // Predicated region
    $region2: #{tpu_custom_call.1} parent=1 // pred_check
      _
    $region3: #{tpu_custom_call.1} parent=1 // pred_check_branch
      %17 = sbr.rel (0) target = $region5
    $region4: #{tpu_custom_call.1} parent=1 // pred_region
      %s19 = ssub.s32 512, 512
      %20 = vsyncadd [#allocation3], %s19
      %s21 = sshll.u32 [#allocation2], 4
      %s22 = int_to_ptr.vmem [resolvable:$true] %s21
      %27 = dma.hbm_to_vmem [thread:$0]  %s0, 512, %s22, [#allocation3], 128, 128, 8
    $region5: #{tpu_custom_call.1} parent=1 // pred_fallthru
      _
    // Predicated region
    $region6: #{tpu_custom_call.1} parent=1 // pred_check
      _
    $region7: #{tpu_custom_call.1} parent=1 // pred_check_branch
      %29 = sbr.rel (0) target = $region9
    $region8: #{tpu_custom_call.1} parent=1 // pred_region
      _
    $region9: #{tpu_custom_call.1} parent=1 // pred_fallthru
      _
    // Predicated region
    $region10: #{tpu_custom_call.1} parent=1 // pred_check
      _
    $region11: #{tpu_custom_call.1} parent=1 // pred_check_branch
      %31 = sbr.rel (0) target = $region13
    $region12: #{tpu_custom_call.1} parent=1 // pred_region
      _
    $region13: #{tpu_custom_call.1} parent=1 // pred_fallthru
      _
    // Predicated region
    $region14: #{tpu_custom_call.1} parent=1 // pred_check
      _
    $region15: #{tpu_custom_call.1} parent=1 // pred_check_branch
      %33 = sbr.rel (0) target = $region17
    $region16: #{tpu_custom_call.1} parent=1 // pred_region
      _
    $region17: #{tpu_custom_call.1} parent=1 // pred_fallthru
      _
    // Predicated region
    $region18: #{tpu_custom_call.1} parent=1 // pred_check
      _
    $region19: #{tpu_custom_call.1} parent=1 // pred_check_branch
      %35 = sbr.rel (0) target = $region21
    $region20: #{tpu_custom_call.1} parent=1 // pred_region
      _
    $region21: #{tpu_custom_call.1} parent=1 // pred_fallthru
      _
    // Predicated region
    $region22: #{tpu_custom_call.1} parent=1 // pred_check
      _
    $region23: #{tpu_custom_call.1} parent=1 // pred_check_branch
      %37 = sbr.rel (0) target = $region25
    $region24: #{tpu_custom_call.1} parent=1 // pred_region
      _
    $region25: #{tpu_custom_call.1} parent=1 // pred_fallthru
      _
    // Predicated region
    $region26: #{tpu_custom_call.1} parent=1 // pred_check
      _
    $region27: #{tpu_custom_call.1} parent=1 // pred_check_branch
      %39 = sbr.rel (0) target = $region29
    $region28: #{tpu_custom_call.1} parent=1 // pred_region
      %40 = dma.done [#allocation3], 512
    $region29: #{tpu_custom_call.1} parent=1 // pred_fallthru
      _
    %v41 = vld [vmem:[%s1] sm:$0x3]
    %v42 = vmul.f32 %v41, %v41
    %vm43 = vcmask 1041408
    %v44 = vsel %vm43, %v42, 0.0
    %45 = vadd.xlane.f32.xlu0 %v44
    %v46 = vpop.xlane.xlu0 %45
    %v47 = vrsqrt.pop %v46
    %v48 = vmul.f32 %v46, %v47
    %vm49 = vcmp.eq.f32.partialorder %v46, inf
    %v50 = vsel %vm49, %v46, %v48
    %vm51 = vcmp.eq.f32.partialorder %v46, 0.0
    %v52 = vand.u32 %v46, 2147483648
    %v53 = vsel %vm51, %v52, %v50
    %v54 = vmax.f32 %v53, 1e-12
    %v55 = vrcp.pop %v54
    %v56 = vmul.f32 %v41, %v55
    %v57 = vld [vmem:[#allocation2] sm:$0xff]
    %v58 = vld [vmem:[#allocation2 + $0x8] sm:$0xff]
    %v59 = vld [vmem:[#allocation2 + $0x10] sm:$0xff]
    %v60 = vld [vmem:[#allocation2 + $0x18] sm:$0xff]
    %v61 = vmul.f32 %v57, %v57
    %v62 = vmul.f32 %v58, %v58
    %v63 = vmul.f32 %v59, %v59
    %v64 = vmul.f32 %v60, %v60
    %65 = vadd.xlane.f32.xlu0 %v61
    %v66 = vpop.xlane.xlu0 %65
    %67 = vadd.xlane.f32.xlu0 %v62
    %v68 = vpop.xlane.xlu0 %67
    %69 = vadd.xlane.f32.xlu0 %v63
    %v70 = vpop.xlane.xlu0 %69
    %71 = vadd.xlane.f32.xlu0 %v64
    %v72 = vpop.xlane.xlu0 %71
    %v73 = vrsqrt.pop %v66
    %v74 = vmul.f32 %v66, %v73
    %vm75 = vcmp.eq.f32.partialorder %v66, inf
    %v76 = vsel %vm75, %v66, %v74
    %vm77 = vcmp.eq.f32.partialorder %v66, 0.0
    %v78 = vand.u32 %v66, 2147483648
    %v79 = vsel %vm77, %v78, %v76
    %v80 = vrsqrt.pop %v68
    %v81 = vmul.f32 %v68, %v80
    %vm82 = vcmp.eq.f32.partialorder %v68, inf
    %v83 = vsel %vm82, %v68, %v81
    %vm84 = vcmp.eq.f32.partialorder %v68, 0.0
    %v85 = vand.u32 %v68, 2147483648
    %v86 = vsel %vm84, %v85, %v83
    %v87 = vrsqrt.pop %v70
    %v88 = vmul.f32 %v70, %v87
    %vm89 = vcmp.eq.f32.partialorder %v70, inf
    %v90 = vsel %vm89, %v70, %v88
    %vm91 = vcmp.eq.f32.partialorder %v70, 0.0
    %v92 = vand.u32 %v70, 2147483648
    %v93 = vsel %vm91, %v92, %v90
    %v94 = vrsqrt.pop %v72
    %v95 = vmul.f32 %v72, %v94
    %vm96 = vcmp.eq.f32.partialorder %v72, inf
    %v97 = vsel %vm96, %v72, %v95
    %vm98 = vcmp.eq.f32.partialorder %v72, 0.0
    %v99 = vand.u32 %v72, 2147483648
    %v100 = vsel %vm98, %v99, %v97
    %v101 = vmax.f32 %v79, 1e-12
    %v102 = vmax.f32 %v86, 1e-12
    %v103 = vmax.f32 %v93, 1e-12
    %v104 = vmax.f32 %v100, 1e-12
    %v105 = vrcp.pop %v101
    %v106 = vmul.f32 %v57, %v105
    %v107 = vrcp.pop %v102
    %v108 = vmul.f32 %v58, %v107
    %v109 = vrcp.pop %v103
    %v110 = vmul.f32 %v59, %v109
    %v111 = vrcp.pop %v104
    %v112 = vmul.f32 %v60, %v111
    %113 = vmatprep.subr.mxu0 0.0
    %114 = vmatpush1.xpose.msra.mxu0 %v106
    %115 = vmatprep.subr.mxu0 0.0
    %116 = vmatpush1.xpose.msra.mxu0 %v108
    %117 = vmatprep.subr.mxu0 0.0
    %118 = vmatpush1.xpose.msra.mxu0 %v110
    %119 = vmatprep.subr.mxu0 0.0
    %120 = vmatpush1.xpose.msra.mxu0 %v112
    %121 = vmatprep.subr.mxu0 0.0
    %122 = vmatpush1.xpose.msra.mxu0 0.0
    %123 = vmatprep.subr.mxu0 0.0
    %124 = vmatpush1.xpose.msra.mxu0 0.0
    %125 = vmatprep.subr.mxu0 0.0
    %126 = vmatpush1.xpose.msra.mxu0 0.0
    %127 = vmatprep.subr.mxu0 0.0
    %128 = vmatpush1.xpose.msra.mxu0 0.0
    %129 = vmatprep.subr.mxu0 0.0
    %130 = vmatpush1.xpose.msra.mxu0 0.0
    %131 = vmatprep.subr.mxu0 0.0
    %132 = vmatpush1.xpose.msra.mxu0 0.0
    %133 = vmatprep.subr.mxu0 0.0
    %134 = vmatpush1.xpose.msra.mxu0 0.0
    %135 = vmatprep.subr.mxu0 0.0
    %136 = vmatpush1.xpose.msra.mxu0 0.0
    %137 = vmatprep.subr.mxu0 0.0
    %138 = vmatpush1.xpose.msra.mxu0 0.0
    %139 = vmatprep.subr.mxu0 0.0
    %140 = vmatpush1.xpose.msra.mxu0 0.0
    %141 = vmatprep.subr.mxu0 0.0
    %142 = vmatpush1.xpose.msra.mxu0 0.0
    %143 = vmatprep.subr.mxu0 0.0
    %144 = vmatpush1.xpose.msra.mxu0 0.0
    %145 = vmatprep.subr.mxu0 0.0
    %146 = vmatpush1.xpose.msra.mxu0 0.0
    %147 = vmatprep.subr.mxu0 0.0
    %148 = vmatpush1.xpose.msra.mxu0 0.0
    %149 = vmatprep.subr.mxu0 0.0
    %150 = vmatpush1.xpose.msra.mxu0 0.0
    %151 = vmatprep.subr.mxu0 0.0
    %152 = vmatpush1.xpose.msra.mxu0 0.0
    %153 = vmatprep.subr.mxu0 0.0
    %154 = vmatpush1.xpose.msra.mxu0 0.0
    %155 = vmatprep.subr.mxu0 0.0
    %156 = vmatpush1.xpose.msra.mxu0 0.0
    %157 = vmatprep.subr.mxu0 0.0
    %158 = vmatpush1.xpose.msra.mxu0 0.0
    %159 = vmatprep.subr.mxu0 0.0
    %160 = vmatpush1.xpose.msra.mxu0 0.0
    %161 = vmatprep.subr.mxu0 0.0
    %162 = vmatpush1.xpose.msra.mxu0 0.0
    %163 = vmatprep.subr.mxu0 0.0
    %164 = vmatpush1.xpose.msra.mxu0 0.0
    %165 = vmatprep.subr.mxu0 0.0
    %166 = vmatpush1.xpose.msra.mxu0 0.0
    %167 = vmatprep.subr.mxu0 0.0
    %168 = vmatpush1.xpose.msra.mxu0 0.0
    %169 = vmatprep.subr.mxu0 0.0
    %170 = vmatpush1.xpose.msra.mxu0 0.0
    %171 = vmatprep.subr.mxu0 0.0
    %172 = vmatpush1.xpose.msra.mxu0 0.0
    %173 = vmatprep.subr.mxu0 0.0
    %174 = vmatpush1.xpose.msra.mxu0 0.0
    %175 = vmatprep.subr.mxu0 0.0
    %176 = vmatpush1.xpose.msra.mxu0 0.0
    %177 = vmatprep.mubr.f32.mxu0 0.0
    %178 = vmatmul.mubr.f32.gmra.mrb[0].mxu0 %v56
    %v179 = vpop.f32.mrb[0].mxu0
    %v180 = vadd.f32 0.0, %v179
    %v181 = vpop.f32.mrb[0].mxu0
    %182 = vdwg.mxu0
    %184 = vrot.lane.b32.xlu0 %v180, 3
    %v185 = vpop.permute.xlu0 %184
    %187 = vrot.lane.b32.xlu0 %v180, 9
    %v188 = vpop.permute.xlu0 %187
    %vm190 = vcmask 23552
    %v191 = vsel %vm190, 0.0, %v185
    %vm192 = vcmask 154624
    %v193 = vsel %vm192, %v191, 0.0
    %vm194 = vcmask 179200
    %v195 = vsel %vm194, %v193, 0.0
    %vm196 = vcmask 203776
    %v197 = vsel %vm196, %v195, %v188
    %vm198 = vcmask 334848
    %v199 = vsel %vm198, %v197, 0.0
    %v201 = vrot.slane %v199, 7
    %202 = vrot.lane.b32.xlu0 %v201, 127
    %v203 = vpop.permute.xlu0 %202
    %v205 = vrot.slane %v199, 6
    %206 = vrot.lane.b32.xlu0 %v205, 126
    %v207 = vpop.permute.xlu0 %206
    %v209 = vrot.slane %v199, 5
    %210 = vrot.lane.b32.xlu0 %v209, 125
    %v211 = vpop.permute.xlu0 %210
    %v213 = vrot.slane %v199, 4
    %214 = vrot.lane.b32.xlu0 %v213, 124
    %v215 = vpop.permute.xlu0 %214
    %v217 = vrot.slane %v199, 3
    %218 = vrot.lane.b32.xlu0 %v217, 123
    %v219 = vpop.permute.xlu0 %218
    %v221 = vrot.slane %v199, 2
    %222 = vrot.lane.b32.xlu0 %v221, 122
    %v223 = vpop.permute.xlu0 %222
    %v226 = vrot.slane %v199, 1
    %227 = vrot.lane.b32.xlu0 %v226, 127
    %v228 = vpop.permute.xlu0 %227
    %230 = vrot.lane.b32.xlu0 %v199, 126
    %v231 = vpop.permute.xlu0 %230
    %233 = vrot.lane.b32.xlu0 %v201, 125
    %v234 = vpop.permute.xlu0 %233
    %236 = vrot.lane.b32.xlu0 %v205, 124
    %v237 = vpop.permute.xlu0 %236
    %239 = vrot.lane.b32.xlu0 %v209, 123
    %v240 = vpop.permute.xlu0 %239
    %242 = vrot.lane.b32.xlu0 %v213, 122
    %v243 = vpop.permute.xlu0 %242
    %vm245 = vcmask 1040384
    %v246 = vsel %vm245, %v199, %v203
    %v247 = vsel %vm43, %v246, %v207
    %vm248 = vcmask 1042432
    %v249 = vsel %vm248, %v247, %v211
    %vm250 = vcmask 1043456
    %v251 = vsel %vm250, %v249, %v215
    %vm252 = vcmask 1044480
    %v253 = vsel %vm252, %v251, %v219
    %vm254 = vcmask 1045504
    %v255 = vsel %vm254, %v253, %v223
    %vm256 = vcmask 1046528
    %v257 = vsel %vm256, %v255, %v221
    %v258 = vsel %vm245, %v228, %v231
    %v259 = vsel %vm43, %v258, %v234
    %v260 = vsel %vm248, %v259, %v237
    %v261 = vsel %vm250, %v260, %v240
    %v262 = vsel %vm252, %v261, %v243
    %v263 = vld [vmem:[%s2] sm:$0x3]
    %v264 = vld [vmem:[%s3] sm:$0x3]
    %266 = vset.pattern.permute.xlu0 0
    %267 = vperm.xlu0 %266, %v264
    %v268 = vpop.permute.xlu0 %267
    %vm270 = vcmask 113664
    %v272 = vsel %vm270, %v263, 0
    %v275 = vsel %vm254, %v262, 0
    %277 = vmatprep.subr.mxu0 0.0
    %278 = vmatpush1.msra.mxu0 %v257
    %279 = vmatprep.subr.mxu0 0.0
    %280 = vmatpush1.msra.mxu0 %v275
    %281 = vmatprep.subr.mxu0 0.0
    %282 = vmatpush1.msra.mxu0 0.0
    %283 = vmatprep.subr.mxu0 0.0
    %284 = vmatpush1.msra.mxu0 0.0
    %285 = vmatprep.subr.mxu0 0.0
    %286 = vmatpush1.msra.mxu0 0.0
    %287 = vmatprep.subr.mxu0 0.0
    %288 = vmatpush1.msra.mxu0 0.0
    %289 = vmatprep.subr.mxu0 0.0
    %290 = vmatpush1.msra.mxu0 0.0
    %291 = vmatprep.subr.mxu0 0.0
    %292 = vmatpush1.msra.mxu0 0.0
    %293 = vmatprep.subr.mxu0 0.0
    %294 = vmatpush1.msra.mxu0 0.0
    %295 = vmatprep.subr.mxu0 0.0
    %296 = vmatpush1.msra.mxu0 0.0
    %297 = vmatprep.subr.mxu0 0.0
    %298 = vmatpush1.msra.mxu0 0.0
    %299 = vmatprep.subr.mxu0 0.0
    %300 = vmatpush1.msra.mxu0 0.0
    %301 = vmatprep.subr.mxu0 0.0
    %302 = vmatpush1.msra.mxu0 0.0
    %303 = vmatprep.subr.mxu0 0.0
    %304 = vmatpush1.msra.mxu0 0.0
    %305 = vmatprep.subr.mxu0 0.0
    %306 = vmatpush1.msra.mxu0 0.0
    %307 = vmatprep.subr.mxu0 0.0
    %308 = vmatpush1.msra.mxu0 0.0
    %309 = vmatprep.subr.mxu0 0.0
    %310 = vmatpush1.msra.mxu0 0.0
    %311 = vmatprep.subr.mxu0 0.0
    %312 = vmatpush1.msra.mxu0 0.0
    %313 = vmatprep.subr.mxu0 0.0
    %314 = vmatpush1.msra.mxu0 0.0
    %315 = vmatprep.subr.mxu0 0.0
    %316 = vmatpush1.msra.mxu0 0.0
    %317 = vmatprep.subr.mxu0 0.0
    %318 = vmatpush1.msra.mxu0 0.0
    %319 = vmatprep.subr.mxu0 0.0
    %320 = vmatpush1.msra.mxu0 0.0
    %321 = vmatprep.subr.mxu0 0.0
    %322 = vmatpush1.msra.mxu0 0.0
    %323 = vmatprep.subr.mxu0 0.0
    %324 = vmatpush1.msra.mxu0 0.0
    %325 = vmatprep.subr.mxu0 0.0
    %326 = vmatpush1.msra.mxu0 0.0
    %327 = vmatprep.subr.mxu0 0.0
    %328 = vmatpush1.msra.mxu0 0.0
    %329 = vmatprep.subr.mxu0 0.0
    %330 = vmatpush1.msra.mxu0 0.0
    %331 = vmatprep.subr.mxu0 0.0
    %332 = vmatpush1.msra.mxu0 0.0
    %333 = vmatprep.subr.mxu0 0.0
    %334 = vmatpush1.msra.mxu0 0.0
    %335 = vmatprep.subr.mxu0 0.0
    %336 = vmatpush1.msra.mxu0 0.0
    %337 = vmatprep.subr.mxu0 0.0
    %338 = vmatpush1.msra.mxu0 0.0
    %339 = vmatprep.subr.mxu0 0.0
    %340 = vmatpush1.msra.mxu0 0.0
    %341 = vmatprep.mubr.f32.mxu0 0.0
    %342 = vmatmul.mubr.f32.gmra.mrb[0].mxu0 %v272
    %v343 = vpop.f32.mrb[0].mxu0
    %v344 = vadd.f32 %v268, %v343
    %v345 = vpop.f32.mrb[0].mxu0
    %346 = vdwg.mxu0
    %v347 = vmax.f32 %v344, 0.0
    %v349 = vrot.slane %v347, 1
    %v351 = vmax.f32 %v347, %v349
    %v353 = vrot.slane %v351, 7
    %354 = vrot.lane.b32.xlu0 %v353, 106
    %v355 = vpop.permute.xlu0 %354
    %v357 = vsel %vm245, %v351, %v355
    %vm358 = vcmask 123904
    %v359 = vsel %vm358, %v357, -inf
    %360 = vmax.xlane.f32.xlu0 %v359
    %v361 = vpop.xlane.xlu0 %360
    %v362 = vsub.f32 %v357, %v361
    %v363 = vmul.f32 %v362, 1.442695
    %v364 = vpow.pop %v363
    %v365 = vsel %vm358, %v364, 0.0
    %366 = vadd.xlane.f32.xlu0 %v365
    %v367 = vpop.xlane.xlu0 %366
    %v368 = vrcp.pop %v367
    %v369 = vmul.f32 %v364, %v368
    %371 = vrot.lane.b32.xlu0 %v369, 16
    %v372 = vpop.permute.xlu0 %371
    %vm374 = vcmask 130048
    %v375 = vsel %vm374, %v369, %v372
    %v376 = vlaneseq
    %v377 = vand.u32 %v376, 127
    %v378 = vlaneseq
    %v379 = vshrl.u32 %v378, 7
    %v380 = vmul.u32 %v379, 16
    %vm381 = vcmp.ge.s32.totalorder %v377, %v380
    %v382 = vadd.s32 %v379, 1
    %v383 = vmul.u32 %v382, 16
    %vm384 = vcmp.lt.s32.totalorder %v377, %v383
    %vm385 = vmand %vm381, %vm384
    %v386 = vsel %vm385, %v375, 0.0
    %vm387 = vcmask 261120
    %v389 = vsel %vm387, %v386, 0
    %391 = vmatprep.subr.mxu0 0.0
    %392 = vmatpush1.msra.mxu0 %v57
    %393 = vmatprep.subr.mxu0 0.0
    %394 = vmatpush1.msra.mxu0 %v58
    %395 = vmatprep.subr.mxu0 0.0
    %396 = vmatpush1.msra.mxu0 %v59
    %397 = vmatprep.subr.mxu0 0.0
    %398 = vmatpush1.msra.mxu0 %v60
    %399 = vmatprep.subr.mxu0 0.0
    %400 = vmatpush1.msra.mxu0 0.0
    %401 = vmatprep.subr.mxu0 0.0
    %402 = vmatpush1.msra.mxu0 0.0
    %403 = vmatprep.subr.mxu0 0.0
    %404 = vmatpush1.msra.mxu0 0.0
    %405 = vmatprep.subr.mxu0 0.0
    %406 = vmatpush1.msra.mxu0 0.0
    %407 = vmatprep.subr.mxu0 0.0
    %408 = vmatpush1.msra.mxu0 0.0
    %409 = vmatprep.subr.mxu0 0.0
    %410 = vmatpush1.msra.mxu0 0.0
    %411 = vmatprep.subr.mxu0 0.0
    %412 = vmatpush1.msra.mxu0 0.0
    %413 = vmatprep.subr.mxu0 0.0
    %414 = vmatpush1.msra.mxu0 0.0
    %415 = vmatprep.subr.mxu0 0.0
    %416 = vmatpush1.msra.mxu0 0.0
    %417 = vmatprep.subr.mxu0 0.0
    %418 = vmatpush1.msra.mxu0 0.0
    %419 = vmatprep.subr.mxu0 0.0
    %420 = vmatpush1.msra.mxu0 0.0
    %421 = vmatprep.subr.mxu0 0.0
    %422 = vmatpush1.msra.mxu0 0.0
    %423 = vmatprep.subr.mxu0 0.0
    %424 = vmatpush1.msra.mxu0 0.0
    %425 = vmatprep.subr.mxu0 0.0
    %426 = vmatpush1.msra.mxu0 0.0
    %427 = vmatprep.subr.mxu0 0.0
    %428 = vmatpush1.msra.mxu0 0.0
    %429 = vmatprep.subr.mxu0 0.0
    %430 = vmatpush1.msra.mxu0 0.0
    %431 = vmatprep.subr.mxu0 0.0
    %432 = vmatpush1.msra.mxu0 0.0
    %433 = vmatprep.subr.mxu0 0.0
    %434 = vmatpush1.msra.mxu0 0.0
    %435 = vmatprep.subr.mxu0 0.0
    %436 = vmatpush1.msra.mxu0 0.0
    %437 = vmatprep.subr.mxu0 0.0
    %438 = vmatpush1.msra.mxu0 0.0
    %439 = vmatprep.subr.mxu0 0.0
    %440 = vmatpush1.msra.mxu0 0.0
    %441 = vmatprep.subr.mxu0 0.0
    %442 = vmatpush1.msra.mxu0 0.0
    %443 = vmatprep.subr.mxu0 0.0
    %444 = vmatpush1.msra.mxu0 0.0
    %445 = vmatprep.subr.mxu0 0.0
    %446 = vmatpush1.msra.mxu0 0.0
    %447 = vmatprep.subr.mxu0 0.0
    %448 = vmatpush1.msra.mxu0 0.0
    %449 = vmatprep.subr.mxu0 0.0
    %450 = vmatpush1.msra.mxu0 0.0
    %451 = vmatprep.subr.mxu0 0.0
    %452 = vmatpush1.msra.mxu0 0.0
    %453 = vmatprep.subr.mxu0 0.0
    %454 = vmatpush1.msra.mxu0 0.0
    %455 = vmatprep.mubr.f32.mxu0 0.0
    %456 = vmatmul.mubr.f32.gmra.mrb[0].mxu0 %v389
    %v457 = vpop.f32.mrb[0].mxu0
    %v458 = vadd.f32 0.0, %v457
    %v459 = vpop.f32.mrb[0].mxu0
    %460 = vdwg.mxu0
    %v461 = vld [vmem:[%s4] sm:$0x3]
    %v462 = vld [vmem:[%s5] sm:$0x1]
    %v464 = vlaneseq
    %v465 = vshrl.u32 %v464, 7
    %v466 = vsub.s32 0, %v465
    %v467 = vrot.slane %v462, %v466
    %469 = vmatprep.subr.mxu0 0.0
    %470 = vmatpush1.xpose.msra.mxu0 %v461
    %471 = vmatprep.subr.mxu0 0.0
    %472 = vmatpush1.xpose.msra.mxu0 0.0
    %473 = vmatprep.subr.mxu0 0.0
    %474 = vmatpush1.xpose.msra.mxu0 0.0
    %475 = vmatprep.subr.mxu0 0.0
    %476 = vmatpush1.xpose.msra.mxu0 0.0
    %477 = vmatprep.subr.mxu0 0.0
    %478 = vmatpush1.xpose.msra.mxu0 0.0
    %479 = vmatprep.subr.mxu0 0.0
    %480 = vmatpush1.xpose.msra.mxu0 0.0
    %481 = vmatprep.subr.mxu0 0.0
    %482 = vmatpush1.xpose.msra.mxu0 0.0
    %483 = vmatprep.subr.mxu0 0.0
    %484 = vmatpush1.xpose.msra.mxu0 0.0
    %485 = vmatprep.subr.mxu0 0.0
    %486 = vmatpush1.xpose.msra.mxu0 0.0
    %487 = vmatprep.subr.mxu0 0.0
    %488 = vmatpush1.xpose.msra.mxu0 0.0
    %489 = vmatprep.subr.mxu0 0.0
    %490 = vmatpush1.xpose.msra.mxu0 0.0
    %491 = vmatprep.subr.mxu0 0.0
    %492 = vmatpush1.xpose.msra.mxu0 0.0
    %493 = vmatprep.subr.mxu0 0.0
    %494 = vmatpush1.xpose.msra.mxu0 0.0
    %495 = vmatprep.subr.mxu0 0.0
    %496 = vmatpush1.xpose.msra.mxu0 0.0
    %497 = vmatprep.subr.mxu0 0.0
    %498 = vmatpush1.xpose.msra.mxu0 0.0
    %499 = vmatprep.subr.mxu0 0.0
    %500 = vmatpush1.xpose.msra.mxu0 0.0
    %501 = vmatprep.subr.mxu0 0.0
    %502 = vmatpush1.xpose.msra.mxu0 0.0
    %503 = vmatprep.subr.mxu0 0.0
    %504 = vmatpush1.xpose.msra.mxu0 0.0
    %505 = vmatprep.subr.mxu0 0.0
    %506 = vmatpush1.xpose.msra.mxu0 0.0
    %507 = vmatprep.subr.mxu0 0.0
    %508 = vmatpush1.xpose.msra.mxu0 0.0
    %509 = vmatprep.subr.mxu0 0.0
    %510 = vmatpush1.xpose.msra.mxu0 0.0
    %511 = vmatprep.subr.mxu0 0.0
    %512 = vmatpush1.xpose.msra.mxu0 0.0
    %513 = vmatprep.subr.mxu0 0.0
    %514 = vmatpush1.xpose.msra.mxu0 0.0
    %515 = vmatprep.subr.mxu0 0.0
    %516 = vmatpush1.xpose.msra.mxu0 0.0
    %517 = vmatprep.subr.mxu0 0.0
    %518 = vmatpush1.xpose.msra.mxu0 0.0
    %519 = vmatprep.subr.mxu0 0.0
    %520 = vmatpush1.xpose.msra.mxu0 0.0
    %521 = vmatprep.subr.mxu0 0.0
    %522 = vmatpush1.xpose.msra.mxu0 0.0
    %523 = vmatprep.subr.mxu0 0.0
    %524 = vmatpush1.xpose.msra.mxu0 0.0
    %525 = vmatprep.subr.mxu0 0.0
    %526 = vmatpush1.xpose.msra.mxu0 0.0
    %527 = vmatprep.subr.mxu0 0.0
    %528 = vmatpush1.xpose.msra.mxu0 0.0
    %529 = vmatprep.subr.mxu0 0.0
    %530 = vmatpush1.xpose.msra.mxu0 0.0
    %531 = vmatprep.subr.mxu0 0.0
    %532 = vmatpush1.xpose.msra.mxu0 0.0
    %533 = vmatprep.mubr.f32.mxu0 0.0
    %534 = vmatmul.mubr.f32.gmra.mrb[0].mxu0 %v458
    %v535 = vpop.f32.mrb[0].mxu0
    %v536 = vadd.f32 %v467, %v535
    %v537 = vpop.f32.mrb[0].mxu0
    %538 = vdwg.mxu0
    %vm539 = vcmask 9216
    %v540 = vsel %vm539, %v536, -inf
    %541 = vmax.xlane.f32.xlu0 %v540
    %v542 = vpop.xlane.xlu0 %541
    %v543 = vsub.f32 %v536, %v542
    %v544 = vmul.f32 %v543, 1.442695
    %v545 = vpow.pop %v544
    %v546 = vsel %vm539, %v545, 0.0
    %547 = vadd.xlane.f32.xlu0 %v546
    %v548 = vpop.xlane.xlu0 %547
    %v549 = vlog2.pop %v548
    %v550 = vmul.f32 %v549, 0.6931472
    %v551 = vadd.f32 %v542, %v550
    %v552 = vsub.f32 %v536, %v551
    %vm553 = vcmask 15360
    %v554 = vsel %vm553, %v552, 0.0
    %555 = vst [vmem:[#allocation5] sm:$0x3] %v554
    %v556 = vsel %vm374, %v369, 0.0
    %557 = vst [vmem:[#allocation6] sm:$0x3] %v556
    // Predicated region
    $region30: #{tpu_custom_call.1} parent=1 // pred_check
      _
    $region31: #{tpu_custom_call.1} parent=1 // pred_check_branch
      %559 = sbr.rel (0) target = $region33
    $region32: #{tpu_custom_call.1} parent=1 // pred_region
      %s561 = ssub.s32 32, 32
      %562 = vsyncadd [#allocation4], %s561
      %s564 = sshll.u32 [#allocation5], 4
      %s565 = int_to_ptr.vmem [resolvable:$true] %s564
      %567 = dma.vmem_to_hbm [thread:$0]  %s565, 32, %s6, [#allocation4]
    $region33: #{tpu_custom_call.1} parent=1 // pred_fallthru
      _
    // Predicated region
    $region34: #{tpu_custom_call.1} parent=1 // pred_check
      _
    $region35: #{tpu_custom_call.1} parent=1 // pred_check_branch
      %569 = sbr.rel (0) target = $region37
    $region36: #{tpu_custom_call.1} parent=1 // pred_region
      %s571 = ssub.s32 32, 32
      %572 = vsyncadd [#allocation7], %s571
      %s574 = sshll.u32 [#allocation6], 4
      %s575 = int_to_ptr.vmem [resolvable:$true] %s574
      %577 = dma.vmem_to_hbm [thread:$0]  %s575, 32, %s7, [#allocation7]
    $region37: #{tpu_custom_call.1} parent=1 // pred_fallthru
      _
    // Predicated region
    $region38: #{tpu_custom_call.1} parent=1 // pred_check
      _
    $region39: #{tpu_custom_call.1} parent=1 // pred_check_branch
      %579 = sbr.rel (0) target = $region41
    $region40: #{tpu_custom_call.1} parent=1 // pred_region
      %580 = dma.done [#allocation4], 32
    $region41: #{tpu_custom_call.1} parent=1 // pred_fallthru
      _
    // Predicated region
    $region42: #{tpu_custom_call.1} parent=1 // pred_check
      _
    $region43: #{tpu_custom_call.1} parent=1 // pred_check_branch
      %582 = sbr.rel (0) target = $region45
    $region44: #{tpu_custom_call.1} parent=1 // pred_region
      %583 = dma.done [#allocation7], 32
    $region45: #{tpu_custom_call.1} parent=1 // pred_fallthru
      _
    %584 = vsyncpa [#allocation3], 1
    %585 = vsyncpa [#allocation4], 1
    %586 = vsyncpa [#allocation7], 1

</llo_original>
